<compile_context>
chip_gen: v7x
topology: tpu7x:2x2x1
jax: 0.10.0
libtpu: 0.0.40
codegen_flags: <defaults>
</compile_context>

<pallas_src>
import math

import jax
import jax.numpy as jnp
from jax.experimental import pallas as pl
from jax.experimental.pallas import tpu as pltpu


def _encoder_kernel(x_ref, w_ref, b_ref, o_ref):
    # x_ref: (block_b, block_n * N_i)   flattened, lane-dense
    # w_ref: (block_n, N_i, N_o)
    # b_ref: (block_n, 1, N_o)
    # o_ref: (block_b, block_n * N_o)   flattened, lane-dense
    block_n, n_i, n_o = w_ref.shape
    for n in range(block_n):                           # static unroll over the n-block
        xn = x_ref[:, pl.ds(n * n_i, n_i)]             # (block_b, N_i)
        y = jnp.dot(xn, w_ref[n], preferred_element_type=jnp.float32)
        y = y + b_ref[n].astype(jnp.float32)           # (1, N_o) broadcast, f32
        o_ref[:, pl.ds(n * n_o, n_o)] = jnp.maximum(y, 0.0).astype(o_ref.dtype)


def _pick_block_b(B, max_b=512):
    """Batch tile: full B when small, else the largest 8-aligned divisor <= max_b."""
    if B <= max_b:
        return B
    for d in range(max_b, 0, -1):
        if B % d == 0 and d % 8 == 0:
            return d
    return B  # no aligned divisor; fall back to the whole batch


def _pick_block_n(N, block_b, N_i, N_o, itemsize=4,
                  vmem_budget=14 * 1024 * 1024, max_unroll=64):
    """Largest divisor of N whose double-buffered tiles fit the VMEM budget.

    Candidates must keep the flattened x / out blocks lane-aligned: either the
    block covers the whole N axis, or the flattened minor dims are multiples of 128.
    """
    def step_bytes(d):
        return itemsize * d * (block_b * N_i + N_i * N_o + N_o + block_b * N_o)

    cands = [d for d in range(1, N + 1)
             if N % d == 0
             and (d == N or ((d * N_i) % 128 == 0 and (d * N_o) % 128 == 0))]
    good = [d for d in cands if 2 * step_bytes(d) <= vmem_budget and d <= max_unroll]
    if good:
        return max(good)
    return min(cands, key=lambda d: (step_bytes(d), d))


def encoder_forward(x, W, b):
    """x: (..., N, N_i), W: (N, N_i, N_o), b: (N, N_o) -> (..., N, N_o)."""
    *lead, N, N_i = x.shape
    _, _, N_o = W.shape
    B = math.prod(lead) if lead else 1

    itemsize = jnp.dtype(x.dtype).itemsize
    block_b = _pick_block_b(B)
    block_n = _pick_block_n(N, block_b, N_i, N_o, itemsize=itemsize)
    grid = (B // block_b, N // block_n)

    # Free, row-major reshapes (no HBM transpose traffic).
    x_flat = x.reshape(B, N * N_i)
    b3 = b.reshape(N, 1, N_o)

    # Raise the scoped-VMEM limit only if the chosen tiles actually need it
    # (kept below v7x's 64 MiB physical VMEM).
    step_bytes = itemsize * block_n * (block_b * N_i + N_i * N_o + N_o + block_b * N_o)
    need = 2 * step_bytes  # double-buffered inputs + output
    vmem_limit = min(int(need * 1.5), 48 * 1024 * 1024) if need > 14 * 1024 * 1024 else None

    out_flat = pl.pallas_call(
        _encoder_kernel,
        out_shape=jax.ShapeDtypeStruct((B, N * N_o), x.dtype),
        grid_spec=pltpu.PrefetchScalarGridSpec(
            num_scalar_prefetch=0,
            grid=grid,
            in_specs=[
                pl.BlockSpec((block_b, block_n * N_i), lambda bi, ni: (bi, ni)),
                pl.BlockSpec((block_n, N_i, N_o), lambda bi, ni: (ni, 0, 0)),
                pl.BlockSpec((block_n, 1, N_o), lambda bi, ni: (ni, 0, 0)),
            ],
            out_specs=pl.BlockSpec((block_b, block_n * N_o), lambda bi, ni: (bi, ni)),
        ),
        compiler_params=pltpu.CompilerParams(
            dimension_semantics=("parallel", "parallel"),
            vmem_limit_bytes=vmem_limit),
    )(x_flat, W, b3)

    return out_flat.reshape(*lead, N, N_o) if lead else out_flat.reshape(N, N_o)


def init_params(key, N, N_i, N_o):
    # Xavier-uniform for W (fan dims N_i, N_o, matching nn.init.xavier_uniform_),
    # zeros for b (matching nn.init.zeros_).
    bound = (6.0 / (N_i + N_o)) ** 0.5
    W = jax.random.uniform(key, (N, N_i, N_o), jnp.float32, -bound, bound)
    b = jnp.zeros((N, N_o), jnp.float32)
    return W, b


def reference_forward(x, W, b):
    y = jnp.einsum('nij,bni->bnj', W, x) + b
    return jnp.maximum(y, 0.0)


if __name__ == "__main__":
    B, N, N_i, N_o = 2, 8, 16, 32
    key = jax.random.PRNGKey(0)
    k_w, k_x = jax.random.split(key)
    W, b = init_params(k_w, N, N_i, N_o)
    x = jax.random.normal(k_x, (B, N, N_i), jnp.float32)

    out = jax.block_until_ready(encoder_forward(x, W, b))
    ref = reference_forward(x, W, b)
    assert out.shape == (B, N, N_o)
    assert jnp.allclose(out, ref, atol=1e-5, rtol=1e-5)
    print("KERNEL_OK")
</pallas_src>

<mosaic_0001>
module attributes {stable_mosaic.version = 11 : i64} {
  func.func @_encoder_kernel(%arg0: i32, %arg1: i32, %arg2: memref<2x128xf32, #tpu.memory_space<vmem>>, %arg3: memref<8x16x32xf32, #tpu.memory_space<vmem>>, %arg4: memref<8x1x32xf32, #tpu.memory_space<vmem>>, %arg5: memref<2x256xf32, #tpu.memory_space<vmem>>) attributes {dimension_semantics = [#tpu.dimension_semantics<parallel>, #tpu.dimension_semantics<parallel>], iteration_bounds = array<i64: 1, 1>, scalar_prefetch = 0 : i64, scratch_operands = 0 : i64, tpu.core_type = #tpu.core_type<tc>, window_params = [{transform_indices = @transform_0, window_bounds = array<i64: 2, 128>}, {transform_indices = @transform_1, window_bounds = array<i64: 8, 16, 32>}, {transform_indices = @transform_2, window_bounds = array<i64: 8, 1, 32>}, {transform_indices = @transform_3, window_bounds = array<i64: 2, 256>}]} {
    %c0 = arith.constant 0 : index
    %c0_0 = arith.constant 0 : index
    %0 = vector.load %arg2[%c0, %c0_0] : memref<2x128xf32, #tpu.memory_space<vmem>>, vector<2x16xf32>
    %c0_1 = arith.constant 0 : index
    %c0_2 = arith.constant 0 : index
    %c0_3 = arith.constant 0 : index
    %1 = vector.load %arg3[%c0_1, %c0_2, %c0_3] : memref<8x16x32xf32, #tpu.memory_space<vmem>>, vector<1x16x32xf32>
    %2 = vector.shape_cast %1 : vector<1x16x32xf32> to vector<16x32xf32>
    %cst = arith.constant dense<0.000000e+00> : vector<2x32xf32>
    %3 = tpu.matmul %0, %2, %cst {dimension_numbers = #tpu.dot_dimension_numbers<[1], [0], [0], [1], [0, 0, 1, 1], [], []>} : vector<2x16xf32>, vector<16x32xf32>, vector<2x32xf32> -> vector<2x32xf32>
    %c0_4 = arith.constant 0 : index
    %c0_5 = arith.constant 0 : index
    %c0_6 = arith.constant 0 : index
    %4 = vector.load %arg4[%c0_4, %c0_5, %c0_6] : memref<8x1x32xf32, #tpu.memory_space<vmem>>, vector<1x1x32xf32>
    %5 = vector.shape_cast %4 : vector<1x1x32xf32> to vector<1x32xf32>
    %6 = vector.broadcast %5 : vector<1x32xf32> to vector<2x32xf32>
    %7 = arith.addf %3, %6 : vector<2x32xf32>
    %cst_7 = arith.constant 0.000000e+00 : f32
    %8 = vector.broadcast %cst_7 : f32 to vector<2x32xf32>
    %9 = arith.maximumf %7, %8 : vector<2x32xf32>
    %c0_8 = arith.constant 0 : index
    %c0_9 = arith.constant 0 : index
    %10 = vector.load %arg5[%c0_8, %c0_9] : memref<2x256xf32, #tpu.memory_space<vmem>>, vector<2x32xf32>
    tpu.vector_store %arg5[%c0_8, %c0_9], %9 {strides = array<i32>} : memref<2x256xf32, #tpu.memory_space<vmem>>, vector<2x32xf32>,
    %c0_10 = arith.constant 0 : index
    %c16 = arith.constant 16 : index
    %11 = vector.load %arg2[%c0_10, %c16] : memref<2x128xf32, #tpu.memory_space<vmem>>, vector<2x16xf32>
    %c1 = arith.constant 1 : index
    %c0_11 = arith.constant 0 : index
    %c0_12 = arith.constant 0 : index
    %12 = vector.load %arg3[%c1, %c0_11, %c0_12] : memref<8x16x32xf32, #tpu.memory_space<vmem>>, vector<1x16x32xf32>
    %13 = vector.shape_cast %12 : vector<1x16x32xf32> to vector<16x32xf32>
    %cst_13 = arith.constant dense<0.000000e+00> : vector<2x32xf32>
    %14 = tpu.matmul %11, %13, %cst_13 {dimension_numbers = #tpu.dot_dimension_numbers<[1], [0], [0], [1], [0, 0, 1, 1], [], []>} : vector<2x16xf32>, vector<16x32xf32>, vector<2x32xf32> -> vector<2x32xf32>
    %c1_14 = arith.constant 1 : index
    %c0_15 = arith.constant 0 : index
    %c0_16 = arith.constant 0 : index
    %15 = vector.load %arg4[%c1_14, %c0_15, %c0_16] : memref<8x1x32xf32, #tpu.memory_space<vmem>>, vector<1x1x32xf32>
    %16 = vector.shape_cast %15 : vector<1x1x32xf32> to vector<1x32xf32>
    %17 = vector.broadcast %16 : vector<1x32xf32> to vector<2x32xf32>
    %18 = arith.addf %14, %17 : vector<2x32xf32>
    %cst_17 = arith.constant 0.000000e+00 : f32
    %19 = vector.broadcast %cst_17 : f32 to vector<2x32xf32>
    %20 = arith.maximumf %18, %19 : vector<2x32xf32>
    %c0_18 = arith.constant 0 : index
    %c32 = arith.constant 32 : index
    %21 = vector.load %arg5[%c0_18, %c32] : memref<2x256xf32, #tpu.memory_space<vmem>>, vector<2x32xf32>
    tpu.vector_store %arg5[%c0_18, %c32], %20 {strides = array<i32>} : memref<2x256xf32, #tpu.memory_space<vmem>>, vector<2x32xf32>,
    %c0_19 = arith.constant 0 : index
    %c32_20 = arith.constant 32 : index
    %22 = vector.load %arg2[%c0_19, %c32_20] : memref<2x128xf32, #tpu.memory_space<vmem>>, vector<2x16xf32>
    %c2 = arith.constant 2 : index
    %c0_21 = arith.constant 0 : index
    %c0_22 = arith.constant 0 : index
    %23 = vector.load %arg3[%c2, %c0_21, %c0_22] : memref<8x16x32xf32, #tpu.memory_space<vmem>>, vector<1x16x32xf32>
    %24 = vector.shape_cast %23 : vector<1x16x32xf32> to vector<16x32xf32>
    %cst_23 = arith.constant dense<0.000000e+00> : vector<2x32xf32>
    %25 = tpu.matmul %22, %24, %cst_23 {dimension_numbers = #tpu.dot_dimension_numbers<[1], [0], [0], [1], [0, 0, 1, 1], [], []>} : vector<2x16xf32>, vector<16x32xf32>, vector<2x32xf32> -> vector<2x32xf32>
    %c2_24 = arith.constant 2 : index
    %c0_25 = arith.constant 0 : index
    %c0_26 = arith.constant 0 : index
    %26 = vector.load %arg4[%c2_24, %c0_25, %c0_26] : memref<8x1x32xf32, #tpu.memory_space<vmem>>, vector<1x1x32xf32>
    %27 = vector.shape_cast %26 : vector<1x1x32xf32> to vector<1x32xf32>
    %28 = vector.broadcast %27 : vector<1x32xf32> to vector<2x32xf32>
    %29 = arith.addf %25, %28 : vector<2x32xf32>
    %cst_27 = arith.constant 0.000000e+00 : f32
    %30 = vector.broadcast %cst_27 : f32 to vector<2x32xf32>
    %31 = arith.maximumf %29, %30 : vector<2x32xf32>
    %c0_28 = arith.constant 0 : index
    %c64 = arith.constant 64 : index
    %32 = vector.load %arg5[%c0_28, %c64] : memref<2x256xf32, #tpu.memory_space<vmem>>, vector<2x32xf32>
    tpu.vector_store %arg5[%c0_28, %c64], %31 {strides = array<i32>} : memref<2x256xf32, #tpu.memory_space<vmem>>, vector<2x32xf32>,
    %c0_29 = arith.constant 0 : index
    %c48 = arith.constant 48 : index
    %33 = vector.load %arg2[%c0_29, %c48] : memref<2x128xf32, #tpu.memory_space<vmem>>, vector<2x16xf32>
    %c3 = arith.constant 3 : index
    %c0_30 = arith.constant 0 : index
    %c0_31 = arith.constant 0 : index
    %34 = vector.load %arg3[%c3, %c0_30, %c0_31] : memref<8x16x32xf32, #tpu.memory_space<vmem>>, vector<1x16x32xf32>
    %35 = vector.shape_cast %34 : vector<1x16x32xf32> to vector<16x32xf32>
    %cst_32 = arith.constant dense<0.000000e+00> : vector<2x32xf32>
    %36 = tpu.matmul %33, %35, %cst_32 {dimension_numbers = #tpu.dot_dimension_numbers<[1], [0], [0], [1], [0, 0, 1, 1], [], []>} : vector<2x16xf32>, vector<16x32xf32>, vector<2x32xf32> -> vector<2x32xf32>
    %c3_33 = arith.constant 3 : index
    %c0_34 = arith.constant 0 : index
    %c0_35 = arith.constant 0 : index
    %37 = vector.load %arg4[%c3_33, %c0_34, %c0_35] : memref<8x1x32xf32, #tpu.memory_space<vmem>>, vector<1x1x32xf32>
    %38 = vector.shape_cast %37 : vector<1x1x32xf32> to vector<1x32xf32>
    %39 = vector.broadcast %38 : vector<1x32xf32> to vector<2x32xf32>
    %40 = arith.addf %36, %39 : vector<2x32xf32>
    %cst_36 = arith.constant 0.000000e+00 : f32
    %41 = vector.broadcast %cst_36 : f32 to vector<2x32xf32>
    %42 = arith.maximumf %40, %41 : vector<2x32xf32>
    %c0_37 = arith.constant 0 : index
    %c96 = arith.constant 96 : index
    %43 = vector.load %arg5[%c0_37, %c96] : memref<2x256xf32, #tpu.memory_space<vmem>>, vector<2x32xf32>
    tpu.vector_store %arg5[%c0_37, %c96], %42 {strides = array<i32>} : memref<2x256xf32, #tpu.memory_space<vmem>>, vector<2x32xf32>,
    %c0_38 = arith.constant 0 : index
    %c64_39 = arith.constant 64 : index
    %44 = vector.load %arg2[%c0_38, %c64_39] : memref<2x128xf32, #tpu.memory_space<vmem>>, vector<2x16xf32>
    %c4 = arith.constant 4 : index
    %c0_40 = arith.constant 0 : index
    %c0_41 = arith.constant 0 : index
    %45 = vector.load %arg3[%c4, %c0_40, %c0_41] : memref<8x16x32xf32, #tpu.memory_space<vmem>>, vector<1x16x32xf32>
    %46 = vector.shape_cast %45 : vector<1x16x32xf32> to vector<16x32xf32>
    %cst_42 = arith.constant dense<0.000000e+00> : vector<2x32xf32>
    %47 = tpu.matmul %44, %46, %cst_42 {dimension_numbers = #tpu.dot_dimension_numbers<[1], [0], [0], [1], [0, 0, 1, 1], [], []>} : vector<2x16xf32>, vector<16x32xf32>, vector<2x32xf32> -> vector<2x32xf32>
    %c4_43 = arith.constant 4 : index
    %c0_44 = arith.constant 0 : index
    %c0_45 = arith.constant 0 : index
    %48 = vector.load %arg4[%c4_43, %c0_44, %c0_45] : memref<8x1x32xf32, #tpu.memory_space<vmem>>, vector<1x1x32xf32>
    %49 = vector.shape_cast %48 : vector<1x1x32xf32> to vector<1x32xf32>
    %50 = vector.broadcast %49 : vector<1x32xf32> to vector<2x32xf32>
    %51 = arith.addf %47, %50 : vector<2x32xf32>
    %cst_46 = arith.constant 0.000000e+00 : f32
    %52 = vector.broadcast %cst_46 : f32 to vector<2x32xf32>
    %53 = arith.maximumf %51, %52 : vector<2x32xf32>
    %c0_47 = arith.constant 0 : index
    %c128 = arith.constant 128 : index
    %54 = vector.load %arg5[%c0_47, %c128] : memref<2x256xf32, #tpu.memory_space<vmem>>, vector<2x32xf32>
    tpu.vector_store %arg5[%c0_47, %c128], %53 {strides = array<i32>} : memref<2x256xf32, #tpu.memory_space<vmem>>, vector<2x32xf32>,
    %c0_48 = arith.constant 0 : index
    %c80 = arith.constant 80 : index
    %55 = vector.load %arg2[%c0_48, %c80] : memref<2x128xf32, #tpu.memory_space<vmem>>, vector<2x16xf32>
    %c5 = arith.constant 5 : index
    %c0_49 = arith.constant 0 : index
    %c0_50 = arith.constant 0 : index
    %56 = vector.load %arg3[%c5, %c0_49, %c0_50] : memref<8x16x32xf32, #tpu.memory_space<vmem>>, vector<1x16x32xf32>
    %57 = vector.shape_cast %56 : vector<1x16x32xf32> to vector<16x32xf32>
    %cst_51 = arith.constant dense<0.000000e+00> : vector<2x32xf32>
    %58 = tpu.matmul %55, %57, %cst_51 {dimension_numbers = #tpu.dot_dimension_numbers<[1], [0], [0], [1], [0, 0, 1, 1], [], []>} : vector<2x16xf32>, vector<16x32xf32>, vector<2x32xf32> -> vector<2x32xf32>
    %c5_52 = arith.constant 5 : index
    %c0_53 = arith.constant 0 : index
    %c0_54 = arith.constant 0 : index
    %59 = vector.load %arg4[%c5_52, %c0_53, %c0_54] : memref<8x1x32xf32, #tpu.memory_space<vmem>>, vector<1x1x32xf32>
    %60 = vector.shape_cast %59 : vector<1x1x32xf32> to vector<1x32xf32>
    %61 = vector.broadcast %60 : vector<1x32xf32> to vector<2x32xf32>
    %62 = arith.addf %58, %61 : vector<2x32xf32>
    %cst_55 = arith.constant 0.000000e+00 : f32
    %63 = vector.broadcast %cst_55 : f32 to vector<2x32xf32>
    %64 = arith.maximumf %62, %63 : vector<2x32xf32>
    %c0_56 = arith.constant 0 : index
    %c160 = arith.constant 160 : index
    %65 = vector.load %arg5[%c0_56, %c160] : memref<2x256xf32, #tpu.memory_space<vmem>>, vector<2x32xf32>
    tpu.vector_store %arg5[%c0_56, %c160], %64 {strides = array<i32>} : memref<2x256xf32, #tpu.memory_space<vmem>>, vector<2x32xf32>,
    %c0_57 = arith.constant 0 : index
    %c96_58 = arith.constant 96 : index
    %66 = vector.load %arg2[%c0_57, %c96_58] : memref<2x128xf32, #tpu.memory_space<vmem>>, vector<2x16xf32>
    %c6 = arith.constant 6 : index
    %c0_59 = arith.constant 0 : index
    %c0_60 = arith.constant 0 : index
    %67 = vector.load %arg3[%c6, %c0_59, %c0_60] : memref<8x16x32xf32, #tpu.memory_space<vmem>>, vector<1x16x32xf32>
    %68 = vector.shape_cast %67 : vector<1x16x32xf32> to vector<16x32xf32>
    %cst_61 = arith.constant dense<0.000000e+00> : vector<2x32xf32>
    %69 = tpu.matmul %66, %68, %cst_61 {dimension_numbers = #tpu.dot_dimension_numbers<[1], [0], [0], [1], [0, 0, 1, 1], [], []>} : vector<2x16xf32>, vector<16x32xf32>, vector<2x32xf32> -> vector<2x32xf32>
    %c6_62 = arith.constant 6 : index
    %c0_63 = arith.constant 0 : index
    %c0_64 = arith.constant 0 : index
    %70 = vector.load %arg4[%c6_62, %c0_63, %c0_64] : memref<8x1x32xf32, #tpu.memory_space<vmem>>, vector<1x1x32xf32>
    %71 = vector.shape_cast %70 : vector<1x1x32xf32> to vector<1x32xf32>
    %72 = vector.broadcast %71 : vector<1x32xf32> to vector<2x32xf32>
    %73 = arith.addf %69, %72 : vector<2x32xf32>
    %cst_65 = arith.constant 0.000000e+00 : f32
    %74 = vector.broadcast %cst_65 : f32 to vector<2x32xf32>
    %75 = arith.maximumf %73, %74 : vector<2x32xf32>
    %c0_66 = arith.constant 0 : index
    %c192 = arith.constant 192 : index
    %76 = vector.load %arg5[%c0_66, %c192] : memref<2x256xf32, #tpu.memory_space<vmem>>, vector<2x32xf32>
    tpu.vector_store %arg5[%c0_66, %c192], %75 {strides = array<i32>} : memref<2x256xf32, #tpu.memory_space<vmem>>, vector<2x32xf32>,
    %c0_67 = arith.constant 0 : index
    %c112 = arith.constant 112 : index
    %77 = vector.load %arg2[%c0_67, %c112] : memref<2x128xf32, #tpu.memory_space<vmem>>, vector<2x16xf32>
    %c7 = arith.constant 7 : index
    %c0_68 = arith.constant 0 : index
    %c0_69 = arith.constant 0 : index
    %78 = vector.load %arg3[%c7, %c0_68, %c0_69] : memref<8x16x32xf32, #tpu.memory_space<vmem>>, vector<1x16x32xf32>
    %79 = vector.shape_cast %78 : vector<1x16x32xf32> to vector<16x32xf32>
    %cst_70 = arith.constant dense<0.000000e+00> : vector<2x32xf32>
    %80 = tpu.matmul %77, %79, %cst_70 {dimension_numbers = #tpu.dot_dimension_numbers<[1], [0], [0], [1], [0, 0, 1, 1], [], []>} : vector<2x16xf32>, vector<16x32xf32>, vector<2x32xf32> -> vector<2x32xf32>
    %c7_71 = arith.constant 7 : index
    %c0_72 = arith.constant 0 : index
    %c0_73 = arith.constant 0 : index
    %81 = vector.load %arg4[%c7_71, %c0_72, %c0_73] : memref<8x1x32xf32, #tpu.memory_space<vmem>>, vector<1x1x32xf32>
    %82 = vector.shape_cast %81 : vector<1x1x32xf32> to vector<1x32xf32>
    %83 = vector.broadcast %82 : vector<1x32xf32> to vector<2x32xf32>
    %84 = arith.addf %80, %83 : vector<2x32xf32>
    %cst_74 = arith.constant 0.000000e+00 : f32
    %85 = vector.broadcast %cst_74 : f32 to vector<2x32xf32>
    %86 = arith.maximumf %84, %85 : vector<2x32xf32>
    %c0_75 = arith.constant 0 : index
    %c224 = arith.constant 224 : index
    %87 = vector.load %arg5[%c0_75, %c224] : memref<2x256xf32, #tpu.memory_space<vmem>>, vector<2x32xf32>
    tpu.vector_store %arg5[%c0_75, %c224], %86 {strides = array<i32>} : memref<2x256xf32, #tpu.memory_space<vmem>>, vector<2x32xf32>,
    return
  }
  func.func @transform_0(%arg0: i32, %arg1: i32) -> (i32, i32) {
    %c0_i32 = arith.constant 0 : i32
    return %arg0, %arg1 : i32, i32
  }
  func.func @transform_1(%arg0: i32, %arg1: i32) -> (i32, i32, i32) {
    %c0_i32 = arith.constant 0 : i32
    %c0_i32_0 = arith.constant 0 : i32
    %c0_i32_1 = arith.constant 0 : i32
    return %arg1, %c0_i32, %c0_i32_0 : i32, i32, i32
  }
  func.func @transform_2(%arg0: i32, %arg1: i32) -> (i32, i32, i32) {
    %c0_i32 = arith.constant 0 : i32
    %c0_i32_0 = arith.constant 0 : i32
    %c0_i32_1 = arith.constant 0 : i32
    return %arg1, %c0_i32, %c0_i32_0 : i32, i32, i32
  }
  func.func @transform_3(%arg0: i32, %arg1: i32) -> (i32, i32) {
    %c0_i32 = arith.constant 0 : i32
    return %arg0, %arg1 : i32, i32
  }
}

</mosaic_0001>

<llo_original>
// kernel: tpu_custom_call.1
$region0: #{tpu_custom_call.1}
  #allocation0 [shape = 'u32[]', space=smem, size = 0x4, offset = 0x4, fixed_abs, tag = 'smem constant byte address 0x4 - core index']
  #allocation1 [shape = 'u32[144,128]{1,0:T(1,128)}', space=vmem, size = 0x12000, scoped, tag = 'internal scratch']
  %s0 = inlined_call_operand.hbm [shape: f32[2,128], index: 0, kind: input, shape index: {}]
  %s1 = inlined_call_operand.hbm [shape: f32[8,16,32], index: 1, kind: input, shape index: {}]
  %s2 = inlined_call_operand.hbm [shape: f32[8,1,32], index: 2, kind: input, shape index: {}]
  %s3 = inlined_call_operand.hbm [shape: f32[2,256], index: 3, kind: output, shape index: {}]
  %s4 = sld [smem:[#allocation0]]
  $region34: #{tpu_custom_call.1} parent=0
    _
  %s6 = ssub.s32 1, %s4
  %s7 = scalar_select 0, %s6, %s4
  $region1: #{tpu_custom_call.1} parent=0
    #allocation2 [shape = 'u8[1024]{0}', space=vmem, size = 0x400, scoped, tag = 'input window, operand 0, single buffered']
    #allocation3 [shape = 's32[1]{0}', space=sflag, size = 0x4, scoped, tag = 'scoped memory for tpu_custom_call.1']
    #allocation4 [shape = 's32[1]{0}', space=sflag, size = 0x4, scoped, tag = 'scoped memory for tpu_custom_call.1']
    #allocation5 [shape = 'u8[65536]{0}', space=vmem, size = 0x10000, scoped, tag = 'input window, operand 1, single buffered']
    #allocation6 [shape = 's32[1]{0}', space=sflag, size = 0x4, scoped, tag = 'scoped memory for tpu_custom_call.1']
    #allocation7 [shape = 'u8[4096]{0}', space=vmem, size = 0x1000, scoped, tag = 'input window, operand 2, single buffered']
    #allocation8 [shape = 'u8[2048]{0}', space=vmem, size = 0x800, scoped, tag = 'output window, operand 0, single buffered']
    %8 = vsyncpa [#allocation3], 0
    %9 = vsyncpa [#allocation6], 0
    %10 = vsyncpa [#allocation4], 0
    // Predicated region
    $region2: #{tpu_custom_call.1} parent=1 // pred_check
      _
    $region3: #{tpu_custom_call.1} parent=1 // pred_check_branch
      %12 = sbr.rel (0) target = $region5
    $region4: #{tpu_custom_call.1} parent=1 // pred_region
      %s14 = ssub.s32 32, 32
      %15 = vsyncadd [#allocation3], %s14
      %s17 = sshll.u32 [#allocation2], 4
      %s18 = int_to_ptr.vmem [resolvable:$true] %s17
      %20 = dma.hbm_to_vmem [thread:$0]  %s0, 32, %s18, [#allocation3]
    $region5: #{tpu_custom_call.1} parent=1 // pred_fallthru
      _
    // Predicated region
    $region6: #{tpu_custom_call.1} parent=1 // pred_check
      _
    $region7: #{tpu_custom_call.1} parent=1 // pred_check_branch
      %22 = sbr.rel (0) target = $region9
    $region8: #{tpu_custom_call.1} parent=1 // pred_region
      %s24 = ssub.s32 2048, 2048
      %25 = vsyncadd [#allocation6], %s24
      %s26 = sshll.u32 [#allocation5], 4
      %s27 = int_to_ptr.vmem [resolvable:$true] %s26
      %32 = dma.hbm_to_vmem [thread:$0]  %s1, 2048, %s27, [#allocation6], 128, 128, 8
    $region9: #{tpu_custom_call.1} parent=1 // pred_fallthru
      _
    // Predicated region
    $region10: #{tpu_custom_call.1} parent=1 // pred_check
      _
    $region11: #{tpu_custom_call.1} parent=1 // pred_check_branch
      %34 = sbr.rel (0) target = $region13
    $region12: #{tpu_custom_call.1} parent=1 // pred_region
      %s36 = ssub.s32 128, 128
      %37 = vsyncadd [#allocation6], %s36
      %s38 = sshll.u32 [#allocation7], 4
      %s39 = int_to_ptr.vmem [resolvable:$true] %s38
      %44 = dma.hbm_to_vmem [thread:$0]  %s2, 128, %s39, [#allocation6], 16, 16, 1
    $region13: #{tpu_custom_call.1} parent=1 // pred_fallthru
      _
    // Predicated region
    $region14: #{tpu_custom_call.1} parent=1 // pred_check
      _
    $region15: #{tpu_custom_call.1} parent=1 // pred_check_branch
      %46 = sbr.rel (0) target = $region17
    $region16: #{tpu_custom_call.1} parent=1 // pred_region
      %47 = dma.done [#allocation3], 32
    $region17: #{tpu_custom_call.1} parent=1 // pred_fallthru
      _
    // Predicated region
    $region18: #{tpu_custom_call.1} parent=1 // pred_check
      _
    $region19: #{tpu_custom_call.1} parent=1 // pred_check_branch
      %49 = sbr.rel (0) target = $region21
    $region20: #{tpu_custom_call.1} parent=1 // pred_region
      %50 = dma.done [#allocation6], 2048
    $region21: #{tpu_custom_call.1} parent=1 // pred_fallthru
      _
    // Predicated region
    $region22: #{tpu_custom_call.1} parent=1 // pred_check
      _
    $region23: #{tpu_custom_call.1} parent=1 // pred_check_branch
      %52 = sbr.rel (0) target = $region25
    $region24: #{tpu_custom_call.1} parent=1 // pred_region
      %53 = dma.done [#allocation6], 128
    $region25: #{tpu_custom_call.1} parent=1 // pred_fallthru
      _
    %v54 = vld [vmem:[#allocation2] sm:$0x3]
    %v55 = vld [vmem:[#allocation5] sm:$0xff]
    %v56 = vld [vmem:[#allocation5 + $0x8] sm:$0xff]
    %v57 = vld [vmem:[#allocation7] sm:$0x1]
    %v59 = vlaneseq
    %v60 = vshrl.u32 %v59, 7
    %v61 = vsub.s32 0, %v60
    %v62 = vrot.slane %v57, %v61
    %vm64 = vcmask 130048
    %v66 = vsel %vm64, %v54, 0
    %68 = vmatprep.subr.mxu0 0.0
    %69 = vmatpush1.msra.mxu0 %v55
    %70 = vmatprep.subr.mxu0 0.0
    %71 = vmatpush1.msra.mxu0 %v56
    %72 = vmatprep.subr.mxu0 0.0
    %73 = vmatpush1.msra.mxu0 0.0
    %74 = vmatprep.subr.mxu0 0.0
    %75 = vmatpush1.msra.mxu0 0.0
    %76 = vmatprep.subr.mxu0 0.0
    %77 = vmatpush1.msra.mxu0 0.0
    %78 = vmatprep.subr.mxu0 0.0
    %79 = vmatpush1.msra.mxu0 0.0
    %80 = vmatprep.subr.mxu0 0.0
    %81 = vmatpush1.msra.mxu0 0.0
    %82 = vmatprep.subr.mxu0 0.0
    %83 = vmatpush1.msra.mxu0 0.0
    %84 = vmatprep.subr.mxu0 0.0
    %85 = vmatpush1.msra.mxu0 0.0
    %86 = vmatprep.subr.mxu0 0.0
    %87 = vmatpush1.msra.mxu0 0.0
    %88 = vmatprep.subr.mxu0 0.0
    %89 = vmatpush1.msra.mxu0 0.0
    %90 = vmatprep.subr.mxu0 0.0
    %91 = vmatpush1.msra.mxu0 0.0
    %92 = vmatprep.subr.mxu0 0.0
    %93 = vmatpush1.msra.mxu0 0.0
    %94 = vmatprep.subr.mxu0 0.0
    %95 = vmatpush1.msra.mxu0 0.0
    %96 = vmatprep.subr.mxu0 0.0
    %97 = vmatpush1.msra.mxu0 0.0
    %98 = vmatprep.subr.mxu0 0.0
    %99 = vmatpush1.msra.mxu0 0.0
    %100 = vmatprep.subr.mxu0 0.0
    %101 = vmatpush1.msra.mxu0 0.0
    %102 = vmatprep.subr.mxu0 0.0
    %103 = vmatpush1.msra.mxu0 0.0
    %104 = vmatprep.subr.mxu0 0.0
    %105 = vmatpush1.msra.mxu0 0.0
    %106 = vmatprep.subr.mxu0 0.0
    %107 = vmatpush1.msra.mxu0 0.0
    %108 = vmatprep.subr.mxu0 0.0
    %109 = vmatpush1.msra.mxu0 0.0
    %110 = vmatprep.subr.mxu0 0.0
    %111 = vmatpush1.msra.mxu0 0.0
    %112 = vmatprep.subr.mxu0 0.0
    %113 = vmatpush1.msra.mxu0 0.0
    %114 = vmatprep.subr.mxu0 0.0
    %115 = vmatpush1.msra.mxu0 0.0
    %116 = vmatprep.subr.mxu0 0.0
    %117 = vmatpush1.msra.mxu0 0.0
    %118 = vmatprep.subr.mxu0 0.0
    %119 = vmatpush1.msra.mxu0 0.0
    %120 = vmatprep.subr.mxu0 0.0
    %121 = vmatpush1.msra.mxu0 0.0
    %122 = vmatprep.subr.mxu0 0.0
    %123 = vmatpush1.msra.mxu0 0.0
    %124 = vmatprep.subr.mxu0 0.0
    %125 = vmatpush1.msra.mxu0 0.0
    %126 = vmatprep.subr.mxu0 0.0
    %127 = vmatpush1.msra.mxu0 0.0
    %128 = vmatprep.subr.mxu0 0.0
    %129 = vmatpush1.msra.mxu0 0.0
    %130 = vmatprep.subr.mxu0 0.0
    %131 = vmatpush1.msra.mxu0 0.0
    %132 = vmatprep.mubr.f32.mxu0 0.0
    %133 = vmatmul.mubr.f32.gmra.mrb[0].mxu0 %v66
    %v134 = vpop.f32.mrb[0].mxu0
    %v135 = vadd.f32 %v62, %v134
    %v136 = vpop.f32.mrb[0].mxu0
    %137 = vdwg.mxu0
    %v138 = vmax.f32 %v135, 0.0
    %vm139 = vcmask 254976
    %140 = vst.msk [vmem:[#allocation8] sm:$0x3] %vm139, %v138
    %v141 = vld [vmem:[#allocation2] sm:$0x3]
    %s142 = scalar_lea.vmem [#allocation5], 16
    %v143 = vld [vmem:[%s142] sm:$0xff]
    %v144 = vld [vmem:[%s142 + $0x8] sm:$0xff]
    %s145 = scalar_lea.vmem [#allocation7], 1
    %v146 = vld [vmem:[%s145] sm:$0x1]
    %v148 = vlaneseq
    %v149 = vshrl.u32 %v148, 7
    %v150 = vsub.s32 0, %v149
    %v151 = vrot.slane %v146, %v150
    %154 = vrot.lane.b32.xlu0 %v141, 112
    %v155 = vpop.permute.xlu0 %154
    %v156 = vsel %vm64, %v155, 0
    %158 = vmatprep.subr.mxu0 0.0
    %159 = vmatpush1.msra.mxu0 %v143
    %160 = vmatprep.subr.mxu0 0.0
    %161 = vmatpush1.msra.mxu0 %v144
    %162 = vmatprep.subr.mxu0 0.0
    %163 = vmatpush1.msra.mxu0 0.0
    %164 = vmatprep.subr.mxu0 0.0
    %165 = vmatpush1.msra.mxu0 0.0
    %166 = vmatprep.subr.mxu0 0.0
    %167 = vmatpush1.msra.mxu0 0.0
    %168 = vmatprep.subr.mxu0 0.0
    %169 = vmatpush1.msra.mxu0 0.0
    %170 = vmatprep.subr.mxu0 0.0
    %171 = vmatpush1.msra.mxu0 0.0
    %172 = vmatprep.subr.mxu0 0.0
    %173 = vmatpush1.msra.mxu0 0.0
    %174 = vmatprep.subr.mxu0 0.0
    %175 = vmatpush1.msra.mxu0 0.0
    %176 = vmatprep.subr.mxu0 0.0
    %177 = vmatpush1.msra.mxu0 0.0
    %178 = vmatprep.subr.mxu0 0.0
    %179 = vmatpush1.msra.mxu0 0.0
    %180 = vmatprep.subr.mxu0 0.0
    %181 = vmatpush1.msra.mxu0 0.0
    %182 = vmatprep.subr.mxu0 0.0
    %183 = vmatpush1.msra.mxu0 0.0
    %184 = vmatprep.subr.mxu0 0.0
    %185 = vmatpush1.msra.mxu0 0.0
    %186 = vmatprep.subr.mxu0 0.0
    %187 = vmatpush1.msra.mxu0 0.0
    %188 = vmatprep.subr.mxu0 0.0
    %189 = vmatpush1.msra.mxu0 0.0
    %190 = vmatprep.subr.mxu0 0.0
    %191 = vmatpush1.msra.mxu0 0.0
    %192 = vmatprep.subr.mxu0 0.0
    %193 = vmatpush1.msra.mxu0 0.0
    %194 = vmatprep.subr.mxu0 0.0
    %195 = vmatpush1.msra.mxu0 0.0
    %196 = vmatprep.subr.mxu0 0.0
    %197 = vmatpush1.msra.mxu0 0.0
    %198 = vmatprep.subr.mxu0 0.0
    %199 = vmatpush1.msra.mxu0 0.0
    %200 = vmatprep.subr.mxu0 0.0
    %201 = vmatpush1.msra.mxu0 0.0
    %202 = vmatprep.subr.mxu0 0.0
    %203 = vmatpush1.msra.mxu0 0.0
    %204 = vmatprep.subr.mxu0 0.0
    %205 = vmatpush1.msra.mxu0 0.0
    %206 = vmatprep.subr.mxu0 0.0
    %207 = vmatpush1.msra.mxu0 0.0
    %208 = vmatprep.subr.mxu0 0.0
    %209 = vmatpush1.msra.mxu0 0.0
    %210 = vmatprep.subr.mxu0 0.0
    %211 = vmatpush1.msra.mxu0 0.0
    %212 = vmatprep.subr.mxu0 0.0
    %213 = vmatpush1.msra.mxu0 0.0
    %214 = vmatprep.subr.mxu0 0.0
    %215 = vmatpush1.msra.mxu0 0.0
    %216 = vmatprep.subr.mxu0 0.0
    %217 = vmatpush1.msra.mxu0 0.0
    %218 = vmatprep.subr.mxu0 0.0
    %219 = vmatpush1.msra.mxu0 0.0
    %220 = vmatprep.subr.mxu0 0.0
    %221 = vmatpush1.msra.mxu0 0.0
    %222 = vmatprep.mubr.f32.mxu0 0.0
    %223 = vmatmul.mubr.f32.gmra.mrb[0].mxu0 %v156
    %v224 = vpop.f32.mrb[0].mxu0
    %v225 = vadd.f32 %v151, %v224
    %v226 = vpop.f32.mrb[0].mxu0
    %227 = vdwg.mxu0
    %v228 = vmax.f32 %v225, 0.0
    %v231 = vunpack.c.l.s4 1983009808
    %v232 = vunpack.c.0.s8 %v231
    %v233 = vlaneseq
    %v234 = vshrl.u32 %v233, 7
    %v235 = vsub.s32 %v232, %v234
    %v236 = vrot.slane %v228, %v235
    %237 = vrot.lane.b32.xlu0 %v236, 32
    %v238 = vpop.permute.xlu0 %237
    %vm240 = vcmask 517376
    %241 = vst.msk [vmem:[#allocation8] sm:$0x3] %vm240, %v238
    %v242 = vld [vmem:[#allocation2] sm:$0x3]
    %s243 = scalar_lea.vmem [#allocation5], 32
    %v244 = vld [vmem:[%s243] sm:$0xff]
    %v245 = vld [vmem:[%s243 + $0x8] sm:$0xff]
    %s246 = scalar_lea.vmem [#allocation7], 2
    %v247 = vld [vmem:[%s246] sm:$0x1]
    %v249 = vlaneseq
    %v250 = vshrl.u32 %v249, 7
    %v251 = vsub.s32 0, %v250
    %v252 = vrot.slane %v247, %v251
    %255 = vrot.lane.b32.xlu0 %v242, 96
    %v256 = vpop.permute.xlu0 %255
    %v257 = vsel %vm64, %v256, 0
    %259 = vmatprep.subr.mxu0 0.0
    %260 = vmatpush1.msra.mxu0 %v244
    %261 = vmatprep.subr.mxu0 0.0
    %262 = vmatpush1.msra.mxu0 %v245
    %263 = vmatprep.subr.mxu0 0.0
    %264 = vmatpush1.msra.mxu0 0.0
    %265 = vmatprep.subr.mxu0 0.0
    %266 = vmatpush1.msra.mxu0 0.0
    %267 = vmatprep.subr.mxu0 0.0
    %268 = vmatpush1.msra.mxu0 0.0
    %269 = vmatprep.subr.mxu0 0.0
    %270 = vmatpush1.msra.mxu0 0.0
    %271 = vmatprep.subr.mxu0 0.0
    %272 = vmatpush1.msra.mxu0 0.0
    %273 = vmatprep.subr.mxu0 0.0
    %274 = vmatpush1.msra.mxu0 0.0
    %275 = vmatprep.subr.mxu0 0.0
    %276 = vmatpush1.msra.mxu0 0.0
    %277 = vmatprep.subr.mxu0 0.0
    %278 = vmatpush1.msra.mxu0 0.0
    %279 = vmatprep.subr.mxu0 0.0
    %280 = vmatpush1.msra.mxu0 0.0
    %281 = vmatprep.subr.mxu0 0.0
    %282 = vmatpush1.msra.mxu0 0.0
    %283 = vmatprep.subr.mxu0 0.0
    %284 = vmatpush1.msra.mxu0 0.0
    %285 = vmatprep.subr.mxu0 0.0
    %286 = vmatpush1.msra.mxu0 0.0
    %287 = vmatprep.subr.mxu0 0.0
    %288 = vmatpush1.msra.mxu0 0.0
    %289 = vmatprep.subr.mxu0 0.0
    %290 = vmatpush1.msra.mxu0 0.0
    %291 = vmatprep.subr.mxu0 0.0
    %292 = vmatpush1.msra.mxu0 0.0
    %293 = vmatprep.subr.mxu0 0.0
    %294 = vmatpush1.msra.mxu0 0.0
    %295 = vmatprep.subr.mxu0 0.0
    %296 = vmatpush1.msra.mxu0 0.0
    %297 = vmatprep.subr.mxu0 0.0
    %298 = vmatpush1.msra.mxu0 0.0
    %299 = vmatprep.subr.mxu0 0.0
    %300 = vmatpush1.msra.mxu0 0.0
    %301 = vmatprep.subr.mxu0 0.0
    %302 = vmatpush1.msra.mxu0 0.0
    %303 = vmatprep.subr.mxu0 0.0
    %304 = vmatpush1.msra.mxu0 0.0
    %305 = vmatprep.subr.mxu0 0.0
    %306 = vmatpush1.msra.mxu0 0.0
    %307 = vmatprep.subr.mxu0 0.0
    %308 = vmatpush1.msra.mxu0 0.0
    %309 = vmatprep.subr.mxu0 0.0
    %310 = vmatpush1.msra.mxu0 0.0
    %311 = vmatprep.subr.mxu0 0.0
    %312 = vmatpush1.msra.mxu0 0.0
    %313 = vmatprep.subr.mxu0 0.0
    %314 = vmatpush1.msra.mxu0 0.0
    %315 = vmatprep.subr.mxu0 0.0
    %316 = vmatpush1.msra.mxu0 0.0
    %317 = vmatprep.subr.mxu0 0.0
    %318 = vmatpush1.msra.mxu0 0.0
    %319 = vmatprep.subr.mxu0 0.0
    %320 = vmatpush1.msra.mxu0 0.0
    %321 = vmatprep.subr.mxu0 0.0
    %322 = vmatpush1.msra.mxu0 0.0
    %323 = vmatprep.mubr.f32.mxu0 0.0
    %324 = vmatmul.mubr.f32.gmra.mrb[0].mxu0 %v257
    %v325 = vpop.f32.mrb[0].mxu0
    %v326 = vadd.f32 %v252, %v325
    %v327 = vpop.f32.mrb[0].mxu0
    %328 = vdwg.mxu0
    %v329 = vmax.f32 %v326, 0.0
    %v332 = vunpack.c.l.s4 1983009808
    %v333 = vunpack.c.0.s8 %v332
    %v334 = vlaneseq
    %v335 = vshrl.u32 %v334, 7
    %v336 = vsub.s32 %v333, %v335
    %v337 = vrot.slane %v329, %v336
    %338 = vrot.lane.b32.xlu0 %v337, 64
    %v339 = vpop.permute.xlu0 %338
    %vm341 = vcmask 779776
    %342 = vst.msk [vmem:[#allocation8] sm:$0x3] %vm341, %v339
    %v343 = vld [vmem:[#allocation2] sm:$0x3]
    %s344 = scalar_lea.vmem [#allocation5], 48
    %v345 = vld [vmem:[%s344] sm:$0xff]
    %v346 = vld [vmem:[%s344 + $0x8] sm:$0xff]
    %s347 = scalar_lea.vmem [#allocation7], 3
    %v348 = vld [vmem:[%s347] sm:$0x1]
    %v350 = vlaneseq
    %v351 = vshrl.u32 %v350, 7
    %v352 = vsub.s32 0, %v351
    %v353 = vrot.slane %v348, %v352
    %356 = vrot.lane.b32.xlu0 %v343, 80
    %v357 = vpop.permute.xlu0 %356
    %v358 = vsel %vm64, %v357, 0
    %360 = vmatprep.subr.mxu0 0.0
    %361 = vmatpush1.msra.mxu0 %v345
    %362 = vmatprep.subr.mxu0 0.0
    %363 = vmatpush1.msra.mxu0 %v346
    %364 = vmatprep.subr.mxu0 0.0
    %365 = vmatpush1.msra.mxu0 0.0
    %366 = vmatprep.subr.mxu0 0.0
    %367 = vmatpush1.msra.mxu0 0.0
    %368 = vmatprep.subr.mxu0 0.0
    %369 = vmatpush1.msra.mxu0 0.0
    %370 = vmatprep.subr.mxu0 0.0
    %371 = vmatpush1.msra.mxu0 0.0
    %372 = vmatprep.subr.mxu0 0.0
    %373 = vmatpush1.msra.mxu0 0.0
    %374 = vmatprep.subr.mxu0 0.0
    %375 = vmatpush1.msra.mxu0 0.0
    %376 = vmatprep.subr.mxu0 0.0
    %377 = vmatpush1.msra.mxu0 0.0
    %378 = vmatprep.subr.mxu0 0.0
    %379 = vmatpush1.msra.mxu0 0.0
    %380 = vmatprep.subr.mxu0 0.0
    %381 = vmatpush1.msra.mxu0 0.0
    %382 = vmatprep.subr.mxu0 0.0
    %383 = vmatpush1.msra.mxu0 0.0
    %384 = vmatprep.subr.mxu0 0.0
    %385 = vmatpush1.msra.mxu0 0.0
    %386 = vmatprep.subr.mxu0 0.0
    %387 = vmatpush1.msra.mxu0 0.0
    %388 = vmatprep.subr.mxu0 0.0
    %389 = vmatpush1.msra.mxu0 0.0
    %390 = vmatprep.subr.mxu0 0.0
    %391 = vmatpush1.msra.mxu0 0.0
    %392 = vmatprep.subr.mxu0 0.0
    %393 = vmatpush1.msra.mxu0 0.0
    %394 = vmatprep.subr.mxu0 0.0
    %395 = vmatpush1.msra.mxu0 0.0
    %396 = vmatprep.subr.mxu0 0.0
    %397 = vmatpush1.msra.mxu0 0.0
    %398 = vmatprep.subr.mxu0 0.0
    %399 = vmatpush1.msra.mxu0 0.0
    %400 = vmatprep.subr.mxu0 0.0
    %401 = vmatpush1.msra.mxu0 0.0
    %402 = vmatprep.subr.mxu0 0.0
    %403 = vmatpush1.msra.mxu0 0.0
    %404 = vmatprep.subr.mxu0 0.0
    %405 = vmatpush1.msra.mxu0 0.0
    %406 = vmatprep.subr.mxu0 0.0
    %407 = vmatpush1.msra.mxu0 0.0
    %408 = vmatprep.subr.mxu0 0.0
    %409 = vmatpush1.msra.mxu0 0.0
    %410 = vmatprep.subr.mxu0 0.0
    %411 = vmatpush1.msra.mxu0 0.0
    %412 = vmatprep.subr.mxu0 0.0
    %413 = vmatpush1.msra.mxu0 0.0
    %414 = vmatprep.subr.mxu0 0.0
    %415 = vmatpush1.msra.mxu0 0.0
    %416 = vmatprep.subr.mxu0 0.0
    %417 = vmatpush1.msra.mxu0 0.0
    %418 = vmatprep.subr.mxu0 0.0
    %419 = vmatpush1.msra.mxu0 0.0
    %420 = vmatprep.subr.mxu0 0.0
    %421 = vmatpush1.msra.mxu0 0.0
    %422 = vmatprep.subr.mxu0 0.0
    %423 = vmatpush1.msra.mxu0 0.0
    %424 = vmatprep.mubr.f32.mxu0 0.0
    %425 = vmatmul.mubr.f32.gmra.mrb[0].mxu0 %v358
    %v426 = vpop.f32.mrb[0].mxu0
    %v427 = vadd.f32 %v353, %v426
    %v428 = vpop.f32.mrb[0].mxu0
    %429 = vdwg.mxu0
    %v430 = vmax.f32 %v427, 0.0
    %v433 = vunpack.c.l.s4 1983009808
    %v434 = vunpack.c.0.s8 %v433
    %v435 = vlaneseq
    %v436 = vshrl.u32 %v435, 7
    %v437 = vsub.s32 %v434, %v436
    %v438 = vrot.slane %v430, %v437
    %439 = vrot.lane.b32.xlu0 %v438, 96
    %v440 = vpop.permute.xlu0 %439
    %vm442 = vcmask 1042176
    %443 = vst.msk [vmem:[#allocation8] sm:$0x3] %vm442, %v440
    %v444 = vld [vmem:[#allocation2] sm:$0x3]
    %s445 = scalar_lea.vmem [#allocation5], 64
    %v446 = vld [vmem:[%s445] sm:$0xff]
    %v447 = vld [vmem:[%s445 + $0x8] sm:$0xff]
    %s448 = scalar_lea.vmem [#allocation7], 4
    %v449 = vld [vmem:[%s448] sm:$0x1]
    %v451 = vlaneseq
    %v452 = vshrl.u32 %v451, 7
    %v453 = vsub.s32 0, %v452
    %v454 = vrot.slane %v449, %v453
    %457 = vrot.lane.b32.xlu0 %v444, 64
    %v458 = vpop.permute.xlu0 %457
    %v459 = vsel %vm64, %v458, 0
    %461 = vmatprep.subr.mxu0 0.0
    %462 = vmatpush1.msra.mxu0 %v446
    %463 = vmatprep.subr.mxu0 0.0
    %464 = vmatpush1.msra.mxu0 %v447
    %465 = vmatprep.subr.mxu0 0.0
    %466 = vmatpush1.msra.mxu0 0.0
    %467 = vmatprep.subr.mxu0 0.0
    %468 = vmatpush1.msra.mxu0 0.0
    %469 = vmatprep.subr.mxu0 0.0
    %470 = vmatpush1.msra.mxu0 0.0
    %471 = vmatprep.subr.mxu0 0.0
    %472 = vmatpush1.msra.mxu0 0.0
    %473 = vmatprep.subr.mxu0 0.0
    %474 = vmatpush1.msra.mxu0 0.0
    %475 = vmatprep.subr.mxu0 0.0
    %476 = vmatpush1.msra.mxu0 0.0
    %477 = vmatprep.subr.mxu0 0.0
    %478 = vmatpush1.msra.mxu0 0.0
    %479 = vmatprep.subr.mxu0 0.0
    %480 = vmatpush1.msra.mxu0 0.0
    %481 = vmatprep.subr.mxu0 0.0
    %482 = vmatpush1.msra.mxu0 0.0
    %483 = vmatprep.subr.mxu0 0.0
    %484 = vmatpush1.msra.mxu0 0.0
    %485 = vmatprep.subr.mxu0 0.0
    %486 = vmatpush1.msra.mxu0 0.0
    %487 = vmatprep.subr.mxu0 0.0
    %488 = vmatpush1.msra.mxu0 0.0
    %489 = vmatprep.subr.mxu0 0.0
    %490 = vmatpush1.msra.mxu0 0.0
    %491 = vmatprep.subr.mxu0 0.0
    %492 = vmatpush1.msra.mxu0 0.0
    %493 = vmatprep.subr.mxu0 0.0
    %494 = vmatpush1.msra.mxu0 0.0
    %495 = vmatprep.subr.mxu0 0.0
    %496 = vmatpush1.msra.mxu0 0.0
    %497 = vmatprep.subr.mxu0 0.0
    %498 = vmatpush1.msra.mxu0 0.0
    %499 = vmatprep.subr.mxu0 0.0
    %500 = vmatpush1.msra.mxu0 0.0
    %501 = vmatprep.subr.mxu0 0.0
    %502 = vmatpush1.msra.mxu0 0.0
    %503 = vmatprep.subr.mxu0 0.0
    %504 = vmatpush1.msra.mxu0 0.0
    %505 = vmatprep.subr.mxu0 0.0
    %506 = vmatpush1.msra.mxu0 0.0
    %507 = vmatprep.subr.mxu0 0.0
    %508 = vmatpush1.msra.mxu0 0.0
    %509 = vmatprep.subr.mxu0 0.0
    %510 = vmatpush1.msra.mxu0 0.0
    %511 = vmatprep.subr.mxu0 0.0
    %512 = vmatpush1.msra.mxu0 0.0
    %513 = vmatprep.subr.mxu0 0.0
    %514 = vmatpush1.msra.mxu0 0.0
    %515 = vmatprep.subr.mxu0 0.0
    %516 = vmatpush1.msra.mxu0 0.0
    %517 = vmatprep.subr.mxu0 0.0
    %518 = vmatpush1.msra.mxu0 0.0
    %519 = vmatprep.subr.mxu0 0.0
    %520 = vmatpush1.msra.mxu0 0.0
    %521 = vmatprep.subr.mxu0 0.0
    %522 = vmatpush1.msra.mxu0 0.0
    %523 = vmatprep.subr.mxu0 0.0
    %524 = vmatpush1.msra.mxu0 0.0
    %525 = vmatprep.mubr.f32.mxu0 0.0
    %526 = vmatmul.mubr.f32.gmra.mrb[0].mxu0 %v459
    %v527 = vpop.f32.mrb[0].mxu0
    %v528 = vadd.f32 %v454, %v527
    %v529 = vpop.f32.mrb[0].mxu0
    %530 = vdwg.mxu0
    %v531 = vmax.f32 %v528, 0.0
    %532 = vst.msk [vmem:[#allocation8 + $0x2] sm:$0x3] %vm139, %v531
    %v533 = vld [vmem:[#allocation2] sm:$0x3]
    %s534 = scalar_lea.vmem [#allocation5], 80
    %v535 = vld [vmem:[%s534] sm:$0xff]
    %v536 = vld [vmem:[%s534 + $0x8] sm:$0xff]
    %s537 = scalar_lea.vmem [#allocation7], 5
    %v538 = vld [vmem:[%s537] sm:$0x1]
    %v540 = vlaneseq
    %v541 = vshrl.u32 %v540, 7
    %v542 = vsub.s32 0, %v541
    %v543 = vrot.slane %v538, %v542
    %546 = vrot.lane.b32.xlu0 %v533, 48
    %v547 = vpop.permute.xlu0 %546
    %v548 = vsel %vm64, %v547, 0
    %550 = vmatprep.subr.mxu0 0.0
    %551 = vmatpush1.msra.mxu0 %v535
    %552 = vmatprep.subr.mxu0 0.0
    %553 = vmatpush1.msra.mxu0 %v536
    %554 = vmatprep.subr.mxu0 0.0
    %555 = vmatpush1.msra.mxu0 0.0
    %556 = vmatprep.subr.mxu0 0.0
    %557 = vmatpush1.msra.mxu0 0.0
    %558 = vmatprep.subr.mxu0 0.0
    %559 = vmatpush1.msra.mxu0 0.0
    %560 = vmatprep.subr.mxu0 0.0
    %561 = vmatpush1.msra.mxu0 0.0
    %562 = vmatprep.subr.mxu0 0.0
    %563 = vmatpush1.msra.mxu0 0.0
    %564 = vmatprep.subr.mxu0 0.0
    %565 = vmatpush1.msra.mxu0 0.0
    %566 = vmatprep.subr.mxu0 0.0
    %567 = vmatpush1.msra.mxu0 0.0
    %568 = vmatprep.subr.mxu0 0.0
    %569 = vmatpush1.msra.mxu0 0.0
    %570 = vmatprep.subr.mxu0 0.0
    %571 = vmatpush1.msra.mxu0 0.0
    %572 = vmatprep.subr.mxu0 0.0
    %573 = vmatpush1.msra.mxu0 0.0
    %574 = vmatprep.subr.mxu0 0.0
    %575 = vmatpush1.msra.mxu0 0.0
    %576 = vmatprep.subr.mxu0 0.0
    %577 = vmatpush1.msra.mxu0 0.0
    %578 = vmatprep.subr.mxu0 0.0
    %579 = vmatpush1.msra.mxu0 0.0
    %580 = vmatprep.subr.mxu0 0.0
    %581 = vmatpush1.msra.mxu0 0.0
    %582 = vmatprep.subr.mxu0 0.0
    %583 = vmatpush1.msra.mxu0 0.0
    %584 = vmatprep.subr.mxu0 0.0
    %585 = vmatpush1.msra.mxu0 0.0
    %586 = vmatprep.subr.mxu0 0.0
    %587 = vmatpush1.msra.mxu0 0.0
    %588 = vmatprep.subr.mxu0 0.0
    %589 = vmatpush1.msra.mxu0 0.0
    %590 = vmatprep.subr.mxu0 0.0
    %591 = vmatpush1.msra.mxu0 0.0
    %592 = vmatprep.subr.mxu0 0.0
    %593 = vmatpush1.msra.mxu0 0.0
    %594 = vmatprep.subr.mxu0 0.0
    %595 = vmatpush1.msra.mxu0 0.0
    %596 = vmatprep.subr.mxu0 0.0
    %597 = vmatpush1.msra.mxu0 0.0
    %598 = vmatprep.subr.mxu0 0.0
    %599 = vmatpush1.msra.mxu0 0.0
    %600 = vmatprep.subr.mxu0 0.0
    %601 = vmatpush1.msra.mxu0 0.0
    %602 = vmatprep.subr.mxu0 0.0
    %603 = vmatpush1.msra.mxu0 0.0
    %604 = vmatprep.subr.mxu0 0.0
    %605 = vmatpush1.msra.mxu0 0.0
    %606 = vmatprep.subr.mxu0 0.0
    %607 = vmatpush1.msra.mxu0 0.0
    %608 = vmatprep.subr.mxu0 0.0
    %609 = vmatpush1.msra.mxu0 0.0
    %610 = vmatprep.subr.mxu0 0.0
    %611 = vmatpush1.msra.mxu0 0.0
    %612 = vmatprep.subr.mxu0 0.0
    %613 = vmatpush1.msra.mxu0 0.0
    %614 = vmatprep.mubr.f32.mxu0 0.0
    %615 = vmatmul.mubr.f32.gmra.mrb[0].mxu0 %v548
    %v616 = vpop.f32.mrb[0].mxu0
    %v617 = vadd.f32 %v543, %v616
    %v618 = vpop.f32.mrb[0].mxu0
    %619 = vdwg.mxu0
    %v620 = vmax.f32 %v617, 0.0
    %v623 = vunpack.c.l.s4 1983009808
    %v624 = vunpack.c.0.s8 %v623
    %v625 = vlaneseq
    %v626 = vshrl.u32 %v625, 7
    %v627 = vsub.s32 %v624, %v626
    %v628 = vrot.slane %v620, %v627
    %629 = vrot.lane.b32.xlu0 %v628, 32
    %v630 = vpop.permute.xlu0 %629
    %632 = vst.msk [vmem:[#allocation8 + $0x2] sm:$0x3] %vm240, %v630
    %v633 = vld [vmem:[#allocation2] sm:$0x3]
    %s634 = scalar_lea.vmem [#allocation5], 96
    %v635 = vld [vmem:[%s634] sm:$0xff]
    %v636 = vld [vmem:[%s634 + $0x8] sm:$0xff]
    %s637 = scalar_lea.vmem [#allocation7], 6
    %v638 = vld [vmem:[%s637] sm:$0x1]
    %v640 = vlaneseq
    %v641 = vshrl.u32 %v640, 7
    %v642 = vsub.s32 0, %v641
    %v643 = vrot.slane %v638, %v642
    %646 = vrot.lane.b32.xlu0 %v633, 32
    %v647 = vpop.permute.xlu0 %646
    %v648 = vsel %vm64, %v647, 0
    %650 = vmatprep.subr.mxu0 0.0
    %651 = vmatpush1.msra.mxu0 %v635
    %652 = vmatprep.subr.mxu0 0.0
    %653 = vmatpush1.msra.mxu0 %v636
    %654 = vmatprep.subr.mxu0 0.0
    %655 = vmatpush1.msra.mxu0 0.0
    %656 = vmatprep.subr.mxu0 0.0
    %657 = vmatpush1.msra.mxu0 0.0
    %658 = vmatprep.subr.mxu0 0.0
    %659 = vmatpush1.msra.mxu0 0.0
    %660 = vmatprep.subr.mxu0 0.0
    %661 = vmatpush1.msra.mxu0 0.0
    %662 = vmatprep.subr.mxu0 0.0
    %663 = vmatpush1.msra.mxu0 0.0
    %664 = vmatprep.subr.mxu0 0.0
    %665 = vmatpush1.msra.mxu0 0.0
    %666 = vmatprep.subr.mxu0 0.0
    %667 = vmatpush1.msra.mxu0 0.0
    %668 = vmatprep.subr.mxu0 0.0
    %669 = vmatpush1.msra.mxu0 0.0
    %670 = vmatprep.subr.mxu0 0.0
    %671 = vmatpush1.msra.mxu0 0.0
    %672 = vmatprep.subr.mxu0 0.0
    %673 = vmatpush1.msra.mxu0 0.0
    %674 = vmatprep.subr.mxu0 0.0
    %675 = vmatpush1.msra.mxu0 0.0
    %676 = vmatprep.subr.mxu0 0.0
    %677 = vmatpush1.msra.mxu0 0.0
    %678 = vmatprep.subr.mxu0 0.0
    %679 = vmatpush1.msra.mxu0 0.0
    %680 = vmatprep.subr.mxu0 0.0
    %681 = vmatpush1.msra.mxu0 0.0
    %682 = vmatprep.subr.mxu0 0.0
    %683 = vmatpush1.msra.mxu0 0.0
    %684 = vmatprep.subr.mxu0 0.0
    %685 = vmatpush1.msra.mxu0 0.0
    %686 = vmatprep.subr.mxu0 0.0
    %687 = vmatpush1.msra.mxu0 0.0
    %688 = vmatprep.subr.mxu0 0.0
    %689 = vmatpush1.msra.mxu0 0.0
    %690 = vmatprep.subr.mxu0 0.0
    %691 = vmatpush1.msra.mxu0 0.0
    %692 = vmatprep.subr.mxu0 0.0
    %693 = vmatpush1.msra.mxu0 0.0
    %694 = vmatprep.subr.mxu0 0.0
    %695 = vmatpush1.msra.mxu0 0.0
    %696 = vmatprep.subr.mxu0 0.0
    %697 = vmatpush1.msra.mxu0 0.0
    %698 = vmatprep.subr.mxu0 0.0
    %699 = vmatpush1.msra.mxu0 0.0
    %700 = vmatprep.subr.mxu0 0.0
    %701 = vmatpush1.msra.mxu0 0.0
    %702 = vmatprep.subr.mxu0 0.0
    %703 = vmatpush1.msra.mxu0 0.0
    %704 = vmatprep.subr.mxu0 0.0
    %705 = vmatpush1.msra.mxu0 0.0
    %706 = vmatprep.subr.mxu0 0.0
    %707 = vmatpush1.msra.mxu0 0.0
    %708 = vmatprep.subr.mxu0 0.0
    %709 = vmatpush1.msra.mxu0 0.0
    %710 = vmatprep.subr.mxu0 0.0
    %711 = vmatpush1.msra.mxu0 0.0
    %712 = vmatprep.subr.mxu0 0.0
    %713 = vmatpush1.msra.mxu0 0.0
    %714 = vmatprep.mubr.f32.mxu0 0.0
    %715 = vmatmul.mubr.f32.gmra.mrb[0].mxu0 %v648
    %v716 = vpop.f32.mrb[0].mxu0
    %v717 = vadd.f32 %v643, %v716
    %v718 = vpop.f32.mrb[0].mxu0
    %719 = vdwg.mxu0
    %v720 = vmax.f32 %v717, 0.0
    %v723 = vunpack.c.l.s4 1983009808
    %v724 = vunpack.c.0.s8 %v723
    %v725 = vlaneseq
    %v726 = vshrl.u32 %v725, 7
    %v727 = vsub.s32 %v724, %v726
    %v728 = vrot.slane %v720, %v727
    %729 = vrot.lane.b32.xlu0 %v728, 64
    %v730 = vpop.permute.xlu0 %729
    %732 = vst.msk [vmem:[#allocation8 + $0x2] sm:$0x3] %vm341, %v730
    %v733 = vld [vmem:[#allocation2] sm:$0x3]
    %s734 = scalar_lea.vmem [#allocation5], 112
    %v735 = vld [vmem:[%s734] sm:$0xff]
    %v736 = vld [vmem:[%s734 + $0x8] sm:$0xff]
    %s737 = scalar_lea.vmem [#allocation7], 7
    %v738 = vld [vmem:[%s737] sm:$0x1]
    %v740 = vlaneseq
    %v741 = vshrl.u32 %v740, 7
    %v742 = vsub.s32 0, %v741
    %v743 = vrot.slane %v738, %v742
    %746 = vrot.lane.b32.xlu0 %v733, 16
    %v747 = vpop.permute.xlu0 %746
    %v748 = vsel %vm64, %v747, 0
    %750 = vmatprep.subr.mxu0 0.0
    %751 = vmatpush1.msra.mxu0 %v735
    %752 = vmatprep.subr.mxu0 0.0
    %753 = vmatpush1.msra.mxu0 %v736
    %754 = vmatprep.subr.mxu0 0.0
    %755 = vmatpush1.msra.mxu0 0.0
    %756 = vmatprep.subr.mxu0 0.0
    %757 = vmatpush1.msra.mxu0 0.0
    %758 = vmatprep.subr.mxu0 0.0
    %759 = vmatpush1.msra.mxu0 0.0
    %760 = vmatprep.subr.mxu0 0.0
    %761 = vmatpush1.msra.mxu0 0.0
    %762 = vmatprep.subr.mxu0 0.0
    %763 = vmatpush1.msra.mxu0 0.0
    %764 = vmatprep.subr.mxu0 0.0
    %765 = vmatpush1.msra.mxu0 0.0
    %766 = vmatprep.subr.mxu0 0.0
    %767 = vmatpush1.msra.mxu0 0.0
    %768 = vmatprep.subr.mxu0 0.0
    %769 = vmatpush1.msra.mxu0 0.0
    %770 = vmatprep.subr.mxu0 0.0
    %771 = vmatpush1.msra.mxu0 0.0
    %772 = vmatprep.subr.mxu0 0.0
    %773 = vmatpush1.msra.mxu0 0.0
    %774 = vmatprep.subr.mxu0 0.0
    %775 = vmatpush1.msra.mxu0 0.0
    %776 = vmatprep.subr.mxu0 0.0
    %777 = vmatpush1.msra.mxu0 0.0
    %778 = vmatprep.subr.mxu0 0.0
    %779 = vmatpush1.msra.mxu0 0.0
    %780 = vmatprep.subr.mxu0 0.0
    %781 = vmatpush1.msra.mxu0 0.0
    %782 = vmatprep.subr.mxu0 0.0
    %783 = vmatpush1.msra.mxu0 0.0
    %784 = vmatprep.subr.mxu0 0.0
    %785 = vmatpush1.msra.mxu0 0.0
    %786 = vmatprep.subr.mxu0 0.0
    %787 = vmatpush1.msra.mxu0 0.0
    %788 = vmatprep.subr.mxu0 0.0
    %789 = vmatpush1.msra.mxu0 0.0
    %790 = vmatprep.subr.mxu0 0.0
    %791 = vmatpush1.msra.mxu0 0.0
    %792 = vmatprep.subr.mxu0 0.0
    %793 = vmatpush1.msra.mxu0 0.0
    %794 = vmatprep.subr.mxu0 0.0
    %795 = vmatpush1.msra.mxu0 0.0
    %796 = vmatprep.subr.mxu0 0.0
    %797 = vmatpush1.msra.mxu0 0.0
    %798 = vmatprep.subr.mxu0 0.0
    %799 = vmatpush1.msra.mxu0 0.0
    %800 = vmatprep.subr.mxu0 0.0
    %801 = vmatpush1.msra.mxu0 0.0
    %802 = vmatprep.subr.mxu0 0.0
    %803 = vmatpush1.msra.mxu0 0.0
    %804 = vmatprep.subr.mxu0 0.0
    %805 = vmatpush1.msra.mxu0 0.0
    %806 = vmatprep.subr.mxu0 0.0
    %807 = vmatpush1.msra.mxu0 0.0
    %808 = vmatprep.subr.mxu0 0.0
    %809 = vmatpush1.msra.mxu0 0.0
    %810 = vmatprep.subr.mxu0 0.0
    %811 = vmatpush1.msra.mxu0 0.0
    %812 = vmatprep.subr.mxu0 0.0
    %813 = vmatpush1.msra.mxu0 0.0
    %814 = vmatprep.mubr.f32.mxu0 0.0
    %815 = vmatmul.mubr.f32.gmra.mrb[0].mxu0 %v748
    %v816 = vpop.f32.mrb[0].mxu0
    %v817 = vadd.f32 %v743, %v816
    %v818 = vpop.f32.mrb[0].mxu0
    %819 = vdwg.mxu0
    %v820 = vmax.f32 %v817, 0.0
    %v823 = vunpack.c.l.s4 1983009808
    %v824 = vunpack.c.0.s8 %v823
    %v825 = vlaneseq
    %v826 = vshrl.u32 %v825, 7
    %v827 = vsub.s32 %v824, %v826
    %v828 = vrot.slane %v820, %v827
    %829 = vrot.lane.b32.xlu0 %v828, 96
    %v830 = vpop.permute.xlu0 %829
    %832 = vst.msk [vmem:[#allocation8 + $0x2] sm:$0x3] %vm442, %v830
    // Predicated region
    $region26: #{tpu_custom_call.1} parent=1 // pred_check
      _
    $region27: #{tpu_custom_call.1} parent=1 // pred_check_branch
      %834 = sbr.rel (0) target = $region29
    $region28: #{tpu_custom_call.1} parent=1 // pred_region
      %s836 = ssub.s32 64, 64
      %837 = vsyncadd [#allocation4], %s836
      %s839 = sshll.u32 [#allocation8], 4
      %s840 = int_to_ptr.vmem [resolvable:$true] %s839
      %842 = dma.vmem_to_hbm [thread:$0]  %s840, 64, %s3, [#allocation4]
    $region29: #{tpu_custom_call.1} parent=1 // pred_fallthru
      _
    // Predicated region
    $region30: #{tpu_custom_call.1} parent=1 // pred_check
      _
    $region31: #{tpu_custom_call.1} parent=1 // pred_check_branch
      %844 = sbr.rel (0) target = $region33
    $region32: #{tpu_custom_call.1} parent=1 // pred_region
      %845 = dma.done [#allocation4], 64
    $region33: #{tpu_custom_call.1} parent=1 // pred_fallthru
      _
    %846 = vsyncpa [#allocation3], 1
    %847 = vsyncpa [#allocation6], 1
    %848 = vsyncpa [#allocation4], 1

</llo_original>
